<compile_context>
chip_gen: v7x
topology: tpu7x:2x2x1
jax: 0.10.0
libtpu: 0.0.40
codegen_flags: <defaults>
</compile_context>

<pallas_src>
import jax
import jax.numpy as jnp
from jax.experimental import pallas as pl
from jax.experimental.pallas import tpu as pltpu


def _cdiv(a, b):
    return -(-a // b)


def _round_up(a, b):
    return _cdiv(a, b) * b


def _vmem_budget_bytes():
    """(pipeline working-set budget, vmem_limit_bytes) — generation aware."""
    cap = 64 * 1024 * 1024  # conservative default (v7x per-TensorCore VMEM)
    try:
        cap = int(pltpu.get_tpu_info().vmem_capacity_bytes)
    except Exception:
        pass
    limit = min(cap, 128 * 1024 * 1024)
    # Keep the double-buffered working set well under the limit (mem-bound
    # kernel only needs "big enough" tiles, not maximal ones).
    budget = min(limit // 2, 32 * 1024 * 1024)
    return budget, limit


def _pick_row_tile(h_tile, itemsize, n_rows, budget, pack):
    # Per-row VMEM cost: double-buffered (2 inputs + 1 output) blocks plus
    # f32 temporaries created by the in-kernel upcast.
    bytes_per_row = h_tile * (6 * itemsize + 3 * 4)
    rt = budget // max(bytes_per_row, 1)
    rt = (rt // pack) * pack
    rt = max(pack, min(rt, 2048))
    rt = min(rt, _round_up(n_rows, pack))
    return max(rt, pack)


def _geglu_kernel(a_ref, b_ref, o_ref):
    a = a_ref[...].astype(jnp.float32)
    b = b_ref[...].astype(jnp.float32)
    # Exact (erf-based) GELU, matching torch.nn.functional.gelu default.
    inv_sqrt2 = jnp.float32(0.7071067811865476)
    gelu_b = 0.5 * b * (1.0 + jax.lax.erf(b * inv_sqrt2))
    o_ref[...] = (a * gelu_b).astype(o_ref.dtype)


def _geglu_aligned(x2d, rows, h, itemsize, pack, budget, vmem_limit):
    """H % 128 == 0: two lane-dense column-block specs on the same input."""
    dtype = x2d.dtype
    # Column tile: a multiple of 128 that divides H (capped for VMEM).
    if h <= 2048:
        ht = h
    else:
        ht = 128
        for cand in (2048, 1024, 512, 256):
            if h % cand == 0:
                ht = cand
                break
    n_col_blk = h // ht

    rt = _pick_row_tile(ht, itemsize, rows, budget, pack)
    # Keep >= 2 grid steps when there is enough data (v7x: 2 TensorCores).
    if n_col_blk * _cdiv(rows, rt) < 2 and rows >= 2 * pack:
        rt = _round_up(_cdiv(rows, 2), pack)
    rows_pad = _round_up(rows, rt)
    if rows_pad != rows:
        x2d = jnp.pad(x2d, ((0, rows_pad - rows), (0, 0)))

    out = pl.pallas_call(
        _geglu_kernel,
        out_shape=jax.ShapeDtypeStruct((rows_pad, h), dtype),
        grid_spec=pltpu.PrefetchScalarGridSpec(
            num_scalar_prefetch=0,
            grid=(rows_pad // rt, n_col_blk),
            in_specs=[
                pl.BlockSpec((rt, ht), lambda i, j: (i, j)),              # gate half
                pl.BlockSpec((rt, ht), lambda i, j: (i, j + n_col_blk)),  # gelu half
            ],
            out_specs=pl.BlockSpec((rt, ht), lambda i, j: (i, j)),
        ),
        compiler_params=pltpu.CompilerParams(
            dimension_semantics=("parallel", "parallel"),
            vmem_limit_bytes=vmem_limit,
        ),
    )(x2d, x2d)
    return out[:rows]


def _geglu_flat(x2d, rows, h, itemsize, pack, budget, vmem_limit):
    """H not a multiple of 128: split halves in the wrapper and run a flat,
    lane-dense (rows_flat, 128) elementwise kernel (no masked vst, no mid-lane
    relayout inside the kernel)."""
    dtype = x2d.dtype
    lane = 128
    n = rows * h
    a = x2d[:, :h].reshape(-1)
    b = x2d[:, h:].reshape(-1)

    rows_flat = _cdiv(n, lane)
    rt = _pick_row_tile(lane, itemsize, rows_flat, budget, pack)
    if _cdiv(rows_flat, rt) < 2 and rows_flat >= 2 * pack:
        rt = _round_up(_cdiv(rows_flat, 2), pack)   # keep both v7x TCs busy
    rows_pad = _round_up(rows_flat, rt)
    n_pad = rows_pad * lane
    if n_pad != n:
        a = jnp.pad(a, (0, n_pad - n))
        b = jnp.pad(b, (0, n_pad - n))
    a = a.reshape(rows_pad, lane)
    b = b.reshape(rows_pad, lane)

    out = pl.pallas_call(
        _geglu_kernel,
        out_shape=jax.ShapeDtypeStruct((rows_pad, lane), dtype),
        grid_spec=pltpu.PrefetchScalarGridSpec(
            num_scalar_prefetch=0,
            grid=(rows_pad // rt,),
            in_specs=[
                pl.BlockSpec((rt, lane), lambda i: (i, 0)),
                pl.BlockSpec((rt, lane), lambda i: (i, 0)),
            ],
            out_specs=pl.BlockSpec((rt, lane), lambda i: (i, 0)),
        ),
        compiler_params=pltpu.CompilerParams(
            dimension_semantics=("parallel",),
            vmem_limit_bytes=vmem_limit,
        ),
    )(a, b)
    return out.reshape(-1)[:n].reshape(rows, h)


def geglu(x):
    """x: (..., 2*H) -> (..., H), out = x[..., :H] * gelu(x[..., H:])."""
    *lead, two_h = x.shape
    assert two_h % 2 == 0, "last dim must be even for GEGLU"
    h = two_h // 2

    rows = 1
    for d in lead:
        rows *= d
    rows = max(rows, 1)

    itemsize = jnp.dtype(x.dtype).itemsize
    pack = max(8, 32 // itemsize)  # sublane pack: 8 f32 / 16 bf16 / 32 int8
    budget, vmem_limit = _vmem_budget_bytes()

    x2d = x.reshape(rows, two_h)
    if h % 128 == 0:
        out2d = _geglu_aligned(x2d, rows, h, itemsize, pack, budget, vmem_limit)
    else:
        out2d = _geglu_flat(x2d, rows, h, itemsize, pack, budget, vmem_limit)

    return out2d.reshape(*lead, h)


def geglu_ref(x):
    h = x.shape[-1] // 2
    return x[..., :h] * jax.nn.gelu(x[..., h:], approximate=False)


if __name__ == "__main__":
    key = jax.random.PRNGKey(0)
    k0, k1 = jax.random.split(key)

    # batch=2, seq=8, feature=2*H with H=32 -> output (2, 8, 32)  (H % 128 != 0 path)
    x = jax.random.normal(k0, (2, 8, 64), dtype=jnp.float32)
    out = jax.block_until_ready(geglu(x))
    exp = geglu_ref(x)
    assert out.shape == (2, 8, 32), out.shape
    assert jnp.allclose(out, exp, atol=1e-5, rtol=1e-5), (
        float(jnp.max(jnp.abs(out - exp)))
    )

    # H=128 -> lane-aligned two-BlockSpec path
    x2 = jax.random.normal(k1, (2, 8, 256), dtype=jnp.float32)
    out2 = jax.block_until_ready(geglu(x2))
    exp2 = geglu_ref(x2)
    assert out2.shape == (2, 8, 128), out2.shape
    assert jnp.allclose(out2, exp2, atol=1e-5, rtol=1e-5), (
        float(jnp.max(jnp.abs(out2 - exp2)))
    )

    print("KERNEL_OK")
</pallas_src>

<mosaic_0001>
module attributes {stable_mosaic.version = 11 : i64} {
  func.func @_geglu_kernel(%arg0: i32, %arg1: memref<8x128xf32, #tpu.memory_space<vmem>>, %arg2: memref<8x128xf32, #tpu.memory_space<vmem>>, %arg3: memref<8x128xf32, #tpu.memory_space<vmem>>) attributes {dimension_semantics = [#tpu.dimension_semantics<parallel>], iteration_bounds = array<i64: 1>, scalar_prefetch = 0 : i64, scratch_operands = 0 : i64, tpu.core_type = #tpu.core_type<tc>, window_params = [{transform_indices = @transform_0, window_bounds = array<i64: 8, 128>}, {transform_indices = @transform_1, window_bounds = array<i64: 8, 128>}, {transform_indices = @transform_2, window_bounds = array<i64: 8, 128>}]} {
    %c0 = arith.constant 0 : index
    %c0_0 = arith.constant 0 : index
    %0 = vector.load %arg1[%c0, %c0_0] : memref<8x128xf32, #tpu.memory_space<vmem>>, vector<8x128xf32>
    %c0_1 = arith.constant 0 : index
    %c0_2 = arith.constant 0 : index
    %1 = vector.load %arg2[%c0_1, %c0_2] : memref<8x128xf32, #tpu.memory_space<vmem>>, vector<8x128xf32>
    %cst = arith.constant 5.000000e-01 : f32
    %2 = vector.broadcast %cst : f32 to vector<8x128xf32>
    %3 = arith.mulf %2, %1 : vector<8x128xf32>
    %cst_3 = arith.constant 0.707106769 : f32
    %4 = vector.broadcast %cst_3 : f32 to vector<8x128xf32>
    %5 = arith.mulf %1, %4 : vector<8x128xf32>
    %6 = math.erf %5 : vector<8x128xf32>
    %cst_4 = arith.constant 1.000000e+00 : f32
    %7 = vector.broadcast %cst_4 : f32 to vector<8x128xf32>
    %8 = arith.addf %7, %6 : vector<8x128xf32>
    %9 = arith.mulf %3, %8 : vector<8x128xf32>
    %10 = arith.mulf %0, %9 : vector<8x128xf32>
    %c0_5 = arith.constant 0 : index
    %c0_6 = arith.constant 0 : index
    %11 = vector.load %arg3[%c0_5, %c0_6] : memref<8x128xf32, #tpu.memory_space<vmem>>, vector<8x128xf32>
    tpu.vector_store %arg3[%c0_5, %c0_6], %10 {strides = array<i32>} : memref<8x128xf32, #tpu.memory_space<vmem>>, vector<8x128xf32>,
    return
  }
  func.func @transform_0(%arg0: i32) -> (i32, i32) {
    %c0_i32 = arith.constant 0 : i32
    %c0_i32_0 = arith.constant 0 : i32
    return %arg0, %c0_i32 : i32, i32
  }
  func.func @transform_1(%arg0: i32) -> (i32, i32) {
    %c0_i32 = arith.constant 0 : i32
    %c0_i32_0 = arith.constant 0 : i32
    return %arg0, %c0_i32 : i32, i32
  }
  func.func @transform_2(%arg0: i32) -> (i32, i32) {
    %c0_i32 = arith.constant 0 : i32
    %c0_i32_0 = arith.constant 0 : i32
    return %arg0, %c0_i32 : i32, i32
  }
}

</mosaic_0001>

<llo_original>
// kernel: tpu_custom_call.1
$region0: #{tpu_custom_call.1}
  #allocation0 [shape = 'u32[]', space=smem, size = 0x4, offset = 0x4, fixed_abs, tag = 'smem constant byte address 0x4 - core index']
  #allocation1 [shape = 'u32[144,128]{1,0:T(1,128)}', space=vmem, size = 0x12000, scoped, tag = 'internal scratch']
  %s0 = inlined_call_operand.hbm [shape: f32[8,128], index: 0, kind: input, shape index: {}]
  %s1 = inlined_call_operand.hbm [shape: f32[8,128], index: 1, kind: input, shape index: {}]
  %s2 = inlined_call_operand.hbm [shape: f32[8,128], index: 2, kind: output, shape index: {}]
  %s3 = sld [smem:[#allocation0]]
  $region26: #{tpu_custom_call.1} parent=0
    _
  %s5 = ssub.s32 1, %s3
  %s6 = scalar_select 0, %s5, %s3
  $region1: #{tpu_custom_call.1} parent=0
    #allocation2 [shape = 'u8[4096]{0}', space=vmem, size = 0x1000, scoped, tag = 'input window, operand 0, single buffered']
    #allocation3 [shape = 's32[1]{0}', space=sflag, size = 0x4, scoped, tag = 'scoped memory for tpu_custom_call.1']
    #allocation4 [shape = 's32[1]{0}', space=sflag, size = 0x4, scoped, tag = 'scoped memory for tpu_custom_call.1']
    #allocation5 [shape = 'u8[4096]{0}', space=vmem, size = 0x1000, scoped, tag = 'input window, operand 1, single buffered']
    #allocation6 [shape = 's32[1]{0}', space=sflag, size = 0x4, scoped, tag = 'scoped memory for tpu_custom_call.1']
    #allocation7 [shape = 'u8[4096]{0}', space=vmem, size = 0x1000, scoped, tag = 'output window, operand 0, single buffered']
    %7 = vsyncpa [#allocation3], 0
    %8 = vsyncpa [#allocation6], 0
    %9 = vsyncpa [#allocation4], 0
    // Predicated region
    $region2: #{tpu_custom_call.1} parent=1 // pred_check
      _
    $region3: #{tpu_custom_call.1} parent=1 // pred_check_branch
      %11 = sbr.rel (0) target = $region5
    $region4: #{tpu_custom_call.1} parent=1 // pred_region
      %s13 = ssub.s32 128, 128
      %14 = vsyncadd [#allocation3], %s13
      %s16 = sshll.u32 [#allocation2], 4
      %s17 = int_to_ptr.vmem [resolvable:$true] %s16
      %19 = dma.hbm_to_vmem [thread:$0]  %s0, 128, %s17, [#allocation3]
    $region5: #{tpu_custom_call.1} parent=1 // pred_fallthru
      _
    // Predicated region
    $region6: #{tpu_custom_call.1} parent=1 // pred_check
      _
    $region7: #{tpu_custom_call.1} parent=1 // pred_check_branch
      %21 = sbr.rel (0) target = $region9
    $region8: #{tpu_custom_call.1} parent=1 // pred_region
      %s23 = ssub.s32 128, 128
      %24 = vsyncadd [#allocation6], %s23
      %s26 = sshll.u32 [#allocation5], 4
      %s27 = int_to_ptr.vmem [resolvable:$true] %s26
      %29 = dma.hbm_to_vmem [thread:$0]  %s1, 128, %s27, [#allocation6]
    $region9: #{tpu_custom_call.1} parent=1 // pred_fallthru
      _
    // Predicated region
    $region10: #{tpu_custom_call.1} parent=1 // pred_check
      _
    $region11: #{tpu_custom_call.1} parent=1 // pred_check_branch
      %31 = sbr.rel (0) target = $region13
    $region12: #{tpu_custom_call.1} parent=1 // pred_region
      %32 = dma.done [#allocation3], 128
    $region13: #{tpu_custom_call.1} parent=1 // pred_fallthru
      _
    // Predicated region
    $region14: #{tpu_custom_call.1} parent=1 // pred_check
      _
    $region15: #{tpu_custom_call.1} parent=1 // pred_check_branch
      %34 = sbr.rel (0) target = $region17
    $region16: #{tpu_custom_call.1} parent=1 // pred_region
      %35 = dma.done [#allocation6], 128
    $region17: #{tpu_custom_call.1} parent=1 // pred_fallthru
      _
    %v36 = vld [vmem:[#allocation2] sm:$0xff]
    %v37 = vld [vmem:[#allocation5] sm:$0xff]
    %v38 = vmul.f32 %v37, 0.5
    %v39 = vmul.f32 %v37, 0.70710677
    %v40 = verf.f32.pop %v39
    %v41 = vadd.f32 %v40, 1.0
    %v42 = vmul.f32 %v38, %v41
    %v43 = vmul.f32 %v36, %v42
    %44 = vst [vmem:[#allocation7] sm:$0xff] %v43
    // Predicated region
    $region18: #{tpu_custom_call.1} parent=1 // pred_check
      _
    $region19: #{tpu_custom_call.1} parent=1 // pred_check_branch
      %46 = sbr.rel (0) target = $region21
    $region20: #{tpu_custom_call.1} parent=1 // pred_region
      %s48 = ssub.s32 128, 128
      %49 = vsyncadd [#allocation4], %s48
      %s51 = sshll.u32 [#allocation7], 4
      %s52 = int_to_ptr.vmem [resolvable:$true] %s51
      %54 = dma.vmem_to_hbm [thread:$0]  %s52, 128, %s2, [#allocation4]
    $region21: #{tpu_custom_call.1} parent=1 // pred_fallthru
      _
    // Predicated region
    $region22: #{tpu_custom_call.1} parent=1 // pred_check
      _
    $region23: #{tpu_custom_call.1} parent=1 // pred_check_branch
      %56 = sbr.rel (0) target = $region25
    $region24: #{tpu_custom_call.1} parent=1 // pred_region
      %57 = dma.done [#allocation4], 128
    $region25: #{tpu_custom_call.1} parent=1 // pred_fallthru
      _
    %58 = vsyncpa [#allocation3], 1
    %59 = vsyncpa [#allocation6], 1
    %60 = vsyncpa [#allocation4], 1

</llo_original>
